<compile_context>
chip_gen: v6e
topology: v6e:2x2x1
jax: 0.10.0
libtpu: 0.0.40
codegen_flags: <defaults>
</compile_context>

<pallas_src>
import functools

import numpy as np
import jax
import jax.numpy as jnp
from jax import lax
from jax.experimental import pallas as pl
from jax.experimental.pallas import tpu as pltpu

MARGIN = 0.35
SCALE = 30.0
_EPS = 1e-12


def _am_kernel(x_ref, w_ref, lbl_ref, sw_ref, o_ref):
    """One (TB, TN) output tile of the AM-softmax head.

    x_ref:   (TB, in_dim)  compute dtype, rows pre-scaled by 1/||x_row||
    w_ref:   (in_dim, TN)  compute dtype (raw weight columns)
    lbl_ref: (TB, 1)       int32 class id per row (-1 for padded rows)
    sw_ref:  (1, TN)       f32  SCALE / ||w_col||  (precomputed)
    o_ref:   (TB, TN)      f32
    """
    j = pl.program_id(0)            # class-tile index (leading grid axis)
    tn = o_ref.shape[-1]

    # MXU matmul with f32 accumulation; x already carries 1/||x||.
    logits = jnp.dot(x_ref[...], w_ref[...], preferred_element_type=jnp.float32)

    # SCALE * clamp(cos, -1, 1): one mul + one clip (SCALE pre-folded into sw).
    s_cos = jnp.clip(logits * sw_ref[...], -SCALE, SCALE)

    # In-kernel one-hot from class ids: shift the (TB, 1) labels by this tile's
    # column offset and compare against a local iota (no full-tile index math).
    local_lbl = lbl_ref[...] - j * tn                       # (TB, 1)
    col = lax.broadcasted_iota(jnp.int32, s_cos.shape, 1)   # (TB, TN)
    o_ref[...] = jnp.where(col == local_lbl, s_cos - SCALE * MARGIN, s_cos)


def _round_up(x, m):
    return ((x + m - 1) // m) * m


def _vmem_bytes(tb, tn, in_dim, in_bytes):
    """Estimated double-buffered VMEM footprint of one grid step."""
    x_blk = tb * in_dim * in_bytes
    w_blk = in_dim * tn * in_bytes
    o_blk = tb * tn * 4
    small = tb * 4 + tn * 4
    return 2 * (x_blk + w_blk + o_blk + small)


def _choose_tiles(B, out_dim, in_dim, in_bytes, budget=40 << 20):
    """Pick (tb, tn); inputs are padded up to these, so no divisor cliffs."""
    q = 16 if in_bytes < 4 else 8          # bf16 packs 2 rows per sublane
    tb = 256 if B >= 256 else _round_up(B, q)
    cap_n = _round_up(min(out_dim, 1024), 128)
    for cand in (1024, 512, 256, 128):
        tn = min(cand, cap_n)
        if _vmem_bytes(tb, tn, in_dim, in_bytes) <= budget:
            return tb, tn
    # Very large in_dim: shrink the batch tile before blowing the budget.
    while tb > q and _vmem_bytes(tb, 128, in_dim, in_bytes) > budget:
        tb = _round_up(max(q, tb // 2), q)
    # TODO(synk): add a K ("arbitrary") grid axis with an f32 accumulator
    # scratch so a single (in_dim, 128) f32 weight slab never has to exceed the
    # VMEM budget (matters for in_dim >= ~4k in f32 on v7x's 64 MiB VMEM).
    return tb, min(128, cap_n)


@functools.partial(jax.jit, static_argnames=("compute_dtype",))
def fully_connected_am(x, weight, labels, *, compute_dtype=jnp.float32):
    """AM-softmax head (non model-parallel branch of FullyConnected_AM).

    x:       (B, in_dim)       float32
    weight:  (in_dim, out_dim) float32 (or already compute_dtype)
    labels:  (B,)              int32 class id per row (the boolean mask of the
                               PyTorch forward is built in-kernel from these)
    returns: (B, out_dim)      float32 logits, == scale*(clamp(cos,-1,1) - m*onehot)
    """
    # TODO(synk): arbitrary multi-hot boolean masks (output[label.byte()] = ...)
    # would need a dense (B, out_dim) mask input; per-row class ids cover the
    # standard AM-softmax usage.
    B, in_dim = x.shape
    out_dim = weight.shape[1]
    in_bytes = np.dtype(compute_dtype).itemsize

    tb, tn = _choose_tiles(B, out_dim, in_dim, in_bytes)
    Bp = _round_up(B, tb)
    Np = _round_up(out_dim, tn)

    # Tiny hoisted XLA ops (epsilon-guarded: zero-norm rows/cols give 0 logits
    # instead of the NaN/Inf the unguarded PyTorch reference would produce).
    xf = x.astype(jnp.float32)
    wf = weight.astype(jnp.float32)
    inv_x = lax.rsqrt(jnp.sum(xf * xf, axis=1, keepdims=True) + _EPS)   # (B, 1)
    x_n = (xf * inv_x).astype(compute_dtype)                            # fold 1/|x| into rows
    sw = SCALE * lax.rsqrt(jnp.sum(wf * wf, axis=0, keepdims=True) + _EPS)  # (1, out_dim)

    # TODO(synk): for the bf16 path, pass a weight already stored in bf16 so
    # this cast (a full f32 read of the weight) amortises across calls.
    w_c = weight if weight.dtype == compute_dtype else weight.astype(compute_dtype)

    lbl = labels.astype(jnp.int32).reshape(B, 1)

    # Pad to tile multiples; padded rows are zero, padded labels never match,
    # padded weight columns are zero -> padded outputs are zero and sliced off.
    if Bp != B:
        x_n = jnp.pad(x_n, ((0, Bp - B), (0, 0)))
        lbl = jnp.pad(lbl, ((0, Bp - B), (0, 0)), constant_values=-1)
    if Np != out_dim:
        w_c = jnp.pad(w_c, ((0, 0), (0, Np - out_dim)))
        sw = jnp.pad(sw, ((0, 0), (0, Np - out_dim)))

    # Class tiles outer ("parallel": sharded across TCs on v7x), batch tiles
    # innermost ("arbitrary"): the weight block index is constant across the
    # inner loop, so each weight slab is DMA'd from HBM exactly once.
    grid = (Np // tn, Bp // tb)

    vmem_lim = min(max(_vmem_bytes(tb, tn, in_dim, in_bytes) + (4 << 20), 32 << 20),
                   96 << 20)

    out = pl.pallas_call(
        _am_kernel,
        out_shape=jax.ShapeDtypeStruct((Bp, Np), jnp.float32),
        grid_spec=pltpu.PrefetchScalarGridSpec(
            num_scalar_prefetch=0,
            grid=grid,
            in_specs=[
                pl.BlockSpec((tb, in_dim), lambda j, i: (i, 0)),   # normalized x tile
                pl.BlockSpec((in_dim, tn), lambda j, i: (0, j)),   # weight tile (resident over i)
                pl.BlockSpec((tb, 1), lambda j, i: (i, 0)),        # class ids
                pl.BlockSpec((1, tn), lambda j, i: (0, j)),        # SCALE/|w_col|
            ],
            out_specs=pl.BlockSpec((tb, tn), lambda j, i: (i, j)),
        ),
        compiler_params=pltpu.CompilerParams(
            dimension_semantics=("parallel", "arbitrary"),
            vmem_limit_bytes=vmem_lim,
        ),
    )(x_n, w_c, lbl, sw)

    if Bp != B or Np != out_dim:
        out = out[:B, :out_dim]
    return out


def init_weight(key, in_dim, out_dim):
    # Mirrors: uniform_(-1, 1).renorm_(2, 1, 1e-5).mul_(1e5) -> unit-norm columns.
    w = jax.random.uniform(key, (in_dim, out_dim), jnp.float32, -1.0, 1.0)
    col_norm = jnp.sqrt(jnp.sum(w * w, axis=0, keepdims=True))
    return w / jnp.maximum(col_norm, 1e-12)


if __name__ == "__main__":
    key = jax.random.PRNGKey(0)
    k_x, k_w, k_lbl = jax.random.split(key, 3)

    # Deliberately non-multiples of 8/128 to exercise the padding path.
    B, in_dim, out_dim = 10, 32, 200

    x = jax.random.normal(k_x, (B, in_dim), jnp.float32)
    weight = init_weight(k_w, in_dim, out_dim)
    labels = jax.random.randint(k_lbl, (B,), 0, out_dim, dtype=jnp.int32)

    # f32 path.
    out = fully_connected_am(x, weight, labels)
    jax.block_until_ready(out)
    assert out.shape == (B, out_dim)

    # Reference (matches the PyTorch forward with a one-hot label mask).
    mask = jax.nn.one_hot(labels, out_dim, dtype=jnp.bool_)
    x_norm = jnp.sqrt(jnp.sum(x * x, axis=1, keepdims=True))
    w_norm = jnp.sqrt(jnp.sum(weight * weight, axis=0, keepdims=True))
    cos = jnp.clip(x @ weight / x_norm / w_norm, -1.0, 1.0)
    ref = jnp.where(mask, cos - MARGIN, cos) * SCALE
    assert jnp.allclose(out, ref, atol=1e-3, rtol=1e-3), "f32 mismatch vs reference"

    # bf16 MXU path (halves the dominant weight HBM stream on all generations);
    # cosine error ~1e-2 is amplified by SCALE, hence the loose tolerance.
    out_bf16 = fully_connected_am(x, weight, labels, compute_dtype=jnp.bfloat16)
    jax.block_until_ready(out_bf16)
    assert jnp.allclose(out_bf16, ref, atol=0.5), "bf16 mismatch vs reference"

    print("KERNEL_OK")
</pallas_src>

<mosaic_0001>
module attributes {stable_mosaic.version = 11 : i64} {
  func.func @_am_kernel(%arg0: i32, %arg1: i32, %arg2: memref<16x32xf32, #tpu.memory_space<vmem>>, %arg3: memref<32x256xf32, #tpu.memory_space<vmem>>, %arg4: memref<16x1xi32, #tpu.memory_space<vmem>>, %arg5: memref<1x256xf32, #tpu.memory_space<vmem>>, %arg6: memref<16x256xf32, #tpu.memory_space<vmem>>) attributes {dimension_semantics = [#tpu.dimension_semantics<parallel>, #tpu.dimension_semantics<arbitrary>], iteration_bounds = array<i64: 1, 1>, scalar_prefetch = 0 : i64, scratch_operands = 0 : i64, tpu.core_type = #tpu.core_type<tc>, window_params = [{transform_indices = @transform_0, window_bounds = array<i64: 16, 32>}, {transform_indices = @transform_1, window_bounds = array<i64: 32, 256>}, {transform_indices = @transform_2, window_bounds = array<i64: 16, 1>}, {transform_indices = @transform_3, window_bounds = array<i64: 1, 256>}, {transform_indices = @transform_4, window_bounds = array<i64: 16, 256>}]} {
    %c0 = arith.constant 0 : index
    %c0_0 = arith.constant 0 : index
    %0 = vector.load %arg2[%c0, %c0_0] : memref<16x32xf32, #tpu.memory_space<vmem>>, vector<16x32xf32>
    %c0_1 = arith.constant 0 : index
    %c0_2 = arith.constant 0 : index
    %1 = vector.load %arg3[%c0_1, %c0_2] : memref<32x256xf32, #tpu.memory_space<vmem>>, vector<32x256xf32>
    %cst = arith.constant dense<0.000000e+00> : vector<16x256xf32>
    %2 = tpu.matmul %0, %1, %cst {dimension_numbers = #tpu.dot_dimension_numbers<[1], [0], [0], [1], [0, 0, 1, 1], [], []>} : vector<16x32xf32>, vector<32x256xf32>, vector<16x256xf32> -> vector<16x256xf32>
    %c0_3 = arith.constant 0 : index
    %c0_4 = arith.constant 0 : index
    %3 = vector.load %arg5[%c0_3, %c0_4] : memref<1x256xf32, #tpu.memory_space<vmem>>, vector<1x256xf32>
    %4 = vector.broadcast %3 : vector<1x256xf32> to vector<16x256xf32>
    %5 = arith.mulf %2, %4 : vector<16x256xf32>
    %cst_5 = arith.constant -3.000000e+01 : f32
    %cst_6 = arith.constant 3.000000e+01 : f32
    %6 = vector.broadcast %cst_5 : f32 to vector<16x256xf32>
    %7 = arith.maximumf %6, %5 : vector<16x256xf32>
    %8 = vector.broadcast %cst_6 : f32 to vector<16x256xf32>
    %9 = arith.minimumf %8, %7 : vector<16x256xf32>
    %c0_7 = arith.constant 0 : index
    %c0_8 = arith.constant 0 : index
    %10 = vector.load %arg4[%c0_7, %c0_8] : memref<16x1xi32, #tpu.memory_space<vmem>>, vector<16x1xi32>
    %c256_i32 = arith.constant 256 : i32
    %11 = arith.muli %arg0, %c256_i32 : i32
    %12 = vector.broadcast %11 : i32 to vector<16x1xi32>
    %13 = arith.subi %10, %12 : vector<16x1xi32>
    %14 = tpu.iota {dimensions = array<i32: 1>} : vector<16x256xi32>
    %15 = vector.broadcast %13 : vector<16x1xi32> to vector<16x256xi32>
    %16 = arith.cmpi eq, %14, %15 : vector<16x256xi32>
    %cst_9 = arith.constant 1.050000e+01 : f32
    %17 = vector.broadcast %cst_9 : f32 to vector<16x256xf32>
    %18 = arith.subf %9, %17 : vector<16x256xf32>
    %19 = arith.select %16, %18, %9 : vector<16x256xi1>, vector<16x256xf32>
    %c0_10 = arith.constant 0 : index
    %c0_11 = arith.constant 0 : index
    %20 = vector.load %arg6[%c0_10, %c0_11] : memref<16x256xf32, #tpu.memory_space<vmem>>, vector<16x256xf32>
    tpu.vector_store %arg6[%c0_10, %c0_11], %19 {strides = array<i32>} : memref<16x256xf32, #tpu.memory_space<vmem>>, vector<16x256xf32>,
    return
  }
  func.func @transform_0(%arg0: i32, %arg1: i32) -> (i32, i32) {
    %c0_i32 = arith.constant 0 : i32
    %c0_i32_0 = arith.constant 0 : i32
    return %arg1, %c0_i32 : i32, i32
  }
  func.func @transform_1(%arg0: i32, %arg1: i32) -> (i32, i32) {
    %c0_i32 = arith.constant 0 : i32
    %c0_i32_0 = arith.constant 0 : i32
    return %c0_i32, %arg0 : i32, i32
  }
  func.func @transform_2(%arg0: i32, %arg1: i32) -> (i32, i32) {
    %c0_i32 = arith.constant 0 : i32
    %c0_i32_0 = arith.constant 0 : i32
    return %arg1, %c0_i32 : i32, i32
  }
  func.func @transform_3(%arg0: i32, %arg1: i32) -> (i32, i32) {
    %c0_i32 = arith.constant 0 : i32
    %c0_i32_0 = arith.constant 0 : i32
    return %c0_i32, %arg0 : i32, i32
  }
  func.func @transform_4(%arg0: i32, %arg1: i32) -> (i32, i32) {
    %c0_i32 = arith.constant 0 : i32
    return %arg1, %arg0 : i32, i32
  }
}

</mosaic_0001>

<llo_original>
// kernel: fully_connected_am.1
$region0: #{fully_connected_am.1}
  #allocation0 [shape = 'u32[]', space=smem, size = 0x4, offset = 0x4, fixed_abs, tag = 'smem constant byte address 0x4 - core index']
  #allocation1 [shape = 'u32[144,128]{1,0:T(1,128)}', space=vmem, size = 0x12000, scoped, tag = 'internal scratch']
  %s0 = inlined_call_operand.vmem [shape: f32[16,32], index: 0, kind: input, shape index: {}]
  %s1 = inlined_call_operand.vmem [shape: f32[32,256], index: 1, kind: input, shape index: {}]
  %s2 = inlined_call_operand.vmem [shape: s32[16,1], index: 2, kind: input, shape index: {}]
  %s3 = inlined_call_operand.vmem [shape: f32[1,256], index: 3, kind: input, shape index: {}]
  %s4 = inlined_call_operand.hbm [shape: f32[16,256], index: 4, kind: output, shape index: {}]
  %s5 = sld [smem:[#allocation0]]
  $region26: #{fully_connected_am.1} parent=0
    _
  %s7 = ssub.s32 1, %s5
  %s8 = scalar_select 0, %s7, %s5
  $region1: #{fully_connected_am.1} parent=0
    #allocation2 [shape = 'u8[16384]{0}', space=vmem, size = 0x4000, scoped, tag = 'output window, operand 0, single buffered']
    #allocation3 [shape = 's32[1]{0}', space=sflag, size = 0x4, scoped, tag = 'scoped memory for fully_connected_am.1']
    %9 = vsyncpa [#allocation3], 0
    // Predicated region
    $region2: #{fully_connected_am.1} parent=1 // pred_check
      _
    $region3: #{fully_connected_am.1} parent=1 // pred_check_branch
      %11 = sbr.rel (0) target = $region5
    $region4: #{fully_connected_am.1} parent=1 // pred_region
      _
    $region5: #{fully_connected_am.1} parent=1 // pred_fallthru
      _
    // Predicated region
    $region6: #{fully_connected_am.1} parent=1 // pred_check
      _
    $region7: #{fully_connected_am.1} parent=1 // pred_check_branch
      %13 = sbr.rel (0) target = $region9
    $region8: #{fully_connected_am.1} parent=1 // pred_region
      _
    $region9: #{fully_connected_am.1} parent=1 // pred_fallthru
      _
    // Predicated region
    $region10: #{fully_connected_am.1} parent=1 // pred_check
      _
    $region11: #{fully_connected_am.1} parent=1 // pred_check_branch
      %15 = sbr.rel (0) target = $region13
    $region12: #{fully_connected_am.1} parent=1 // pred_region
      _
    $region13: #{fully_connected_am.1} parent=1 // pred_fallthru
      _
    // Predicated region
    $region14: #{fully_connected_am.1} parent=1 // pred_check
      _
    $region15: #{fully_connected_am.1} parent=1 // pred_check_branch
      %17 = sbr.rel (0) target = $region17
    $region16: #{fully_connected_am.1} parent=1 // pred_region
      _
    $region17: #{fully_connected_am.1} parent=1 // pred_fallthru
      _
    %v18 = vld [vmem:[%s0] sm:$0xff]
    %v19 = vld [vmem:[%s0 + $0x8] sm:$0xff]
    %v20 = vld [vmem:[%s1] sm:$0xff]
    %v21 = vld [vmem:[%s1 + $0x8] sm:$0xff]
    %v22 = vld [vmem:[%s1 + $0x10] sm:$0xff]
    %v23 = vld [vmem:[%s1 + $0x18] sm:$0xff]
    %v24 = vld [vmem:[%s1 + $0x20] sm:$0xff]
    %v25 = vld [vmem:[%s1 + $0x28] sm:$0xff]
    %v26 = vld [vmem:[%s1 + $0x30] sm:$0xff]
    %v27 = vld [vmem:[%s1 + $0x38] sm:$0xff]
    %vm28 = vcmask 261120
    %v30 = vsel %vm28, %v18, 0
    %v33 = vsel %vm28, %v19, 0
    %35 = vmatprep.subr.mxu0 0.0
    %36 = vmatpush1.msra.mxu0 0.0
    %37 = vmatprep.subr.mxu0 0.0
    %38 = vmatpush1.msra.mxu0 0.0
    %39 = vmatprep.subr.mxu0 0.0
    %40 = vmatpush1.msra.mxu0 0.0
    %41 = vmatprep.subr.mxu0 0.0
    %42 = vmatpush1.msra.mxu0 0.0
    %43 = vmatprep.subr.mxu0 0.0
    %44 = vmatpush1.msra.mxu0 0.0
    %45 = vmatprep.subr.mxu0 0.0
    %46 = vmatpush1.msra.mxu0 0.0
    %47 = vmatprep.subr.mxu0 0.0
    %48 = vmatpush1.msra.mxu0 0.0
    %49 = vmatprep.subr.mxu0 0.0
    %50 = vmatpush1.msra.mxu0 0.0
    %51 = vmatprep.subr.mxu0 0.0
    %52 = vmatpush1.msra.mxu0 0.0
    %53 = vmatprep.subr.mxu0 0.0
    %54 = vmatpush1.msra.mxu0 0.0
    %55 = vmatprep.subr.mxu0 0.0
    %56 = vmatpush1.msra.mxu0 0.0
    %57 = vmatprep.subr.mxu0 0.0
    %58 = vmatpush1.msra.mxu0 0.0
    %59 = vmatprep.subr.mxu0 %v27
    %60 = vmatpush1.msra.mxu0 %v26
    %61 = vmatprep.subr.mxu0 %v25
    %62 = vmatpush1.msra.mxu0 %v24
    %63 = vmatprep.subr.mxu0 %v23
    %64 = vmatpush1.msra.mxu0 %v22
    %65 = vmatprep.subr.mxu0 %v21
    %66 = vmatpush1.msra.mxu0 %v20
    %67 = vmatprep.subr.mxu0 0.0
    %68 = vmatpush2.msra.mxu0 0.0
    %69 = vmatprep.subr.mxu0 0.0
    %70 = vmatpush2.msra.mxu0 0.0
    %71 = vmatprep.subr.mxu0 0.0
    %72 = vmatpush2.msra.mxu0 0.0
    %73 = vmatprep.subr.mxu0 0.0
    %74 = vmatpush2.msra.mxu0 0.0
    %75 = vmatprep.subr.mxu0 0.0
    %76 = vmatpush2.msra.mxu0 0.0
    %77 = vmatprep.subr.mxu0 0.0
    %78 = vmatpush2.msra.mxu0 0.0
    %79 = vmatprep.subr.mxu0 0.0
    %80 = vmatpush2.msra.mxu0 0.0
    %81 = vmatprep.subr.mxu0 0.0
    %82 = vmatpush2.msra.mxu0 0.0
    %83 = vmatprep.subr.mxu0 0.0
    %84 = vmatpush2.msra.mxu0 0.0
    %85 = vmatprep.subr.mxu0 0.0
    %86 = vmatpush2.msra.mxu0 0.0
    %87 = vmatprep.subr.mxu0 0.0
    %88 = vmatpush2.msra.mxu0 0.0
    %89 = vmatprep.subr.mxu0 0.0
    %90 = vmatpush2.msra.mxu0 0.0
    %91 = vmatprep.subr.mxu0 0.0
    %92 = vmatpush2.msra.mxu0 0.0
    %93 = vmatprep.subr.mxu0 0.0
    %94 = vmatpush2.msra.mxu0 0.0
    %95 = vmatprep.subr.mxu0 0.0
    %96 = vmatpush2.msra.mxu0 0.0
    %97 = vmatprep.subr.mxu0 0.0
    %98 = vmatpush2.msra.mxu0 0.0
    %99 = vmatprep.mubr.f32.mxu0 0.0
    %100 = vmatmul.mubr.f32.gmra.mxu0 %v30
    %v101 = vpop.f32.mrf.mxu0
    %v102 = vadd.f32 0.0, %v101
    %v103 = vpop.f32.mrf.mxu0
    %v104 = vadd.f32 0.0, %v103
    %105 = vmatprep.mubr.f32.mxu0 0.0
    %106 = vmatmul.mubr.f32.gmra.mxu0 %v33
    %v107 = vpop.f32.mrf.mxu0
    %v108 = vadd.f32 0.0, %v107
    %v109 = vpop.f32.mrf.mxu0
    %v110 = vadd.f32 0.0, %v109
    %111 = vdwg.mxu0
    %v112 = vld [vmem:[%s3] sm:$0x3]
    %v114 = vlaneseq
    %v115 = vshrl.u32 %v114, 7
    %v116 = vsub.s32 0, %v115
    %v117 = vrot.slane %v112, %v116
    %v118 = vlaneseq
    %v119 = vshrl.u32 %v118, 7
    %v120 = vsub.s32 1, %v119
    %v121 = vrot.slane %v112, %v120
    %v124 = vmul.f32 %v102, %v117
    %v125 = vmul.f32 %v104, %v121
    %v126 = vmul.f32 %v108, %v117
    %v127 = vmul.f32 %v110, %v121
    %v128 = vmax.f32 %v124, -30.0
    %v129 = vmax.f32 %v125, -30.0
    %v130 = vmax.f32 %v126, -30.0
    %v131 = vmax.f32 %v127, -30.0
    %v132 = vmin.f32 %v128, 30.0
    %v133 = vmin.f32 %v129, 30.0
    %v134 = vmin.f32 %v130, 30.0
    %v135 = vmin.f32 %v131, 30.0
    %v136 = vld [vmem:[%s2] sm:$0xff]
    %v137 = vld [vmem:[%s2 + $0x8] sm:$0xff]
    %s138 = smul.u32 0, 256
    %v139 = vstv %s138
    %v140 = vsub.s32 %v136, %v139
    %v141 = vsub.s32 %v137, %v139
    %v142 = vlaneseq
    %v143 = vand.u32 %v142, 127
    %v144 = vadd.s32 %v143, 128
    %145 = vset.pattern.permute.xlu0 0
    %146 = vperm.xlu0 %145, %v140
    %v147 = vpop.permute.xlu0 %146
    %148 = vset.pattern.permute.xlu0 0
    %149 = vperm.xlu0 %148, %v141
    %v150 = vpop.permute.xlu0 %149
    %vm151 = vcmp.eq.s32.totalorder %v143, %v147
    %vm152 = vcmp.eq.s32.totalorder %v144, %v147
    %vm153 = vcmp.eq.s32.totalorder %v143, %v150
    %vm154 = vcmp.eq.s32.totalorder %v144, %v150
    %v155 = vsub.f32 %v132, 10.5
    %v156 = vsub.f32 %v133, 10.5
    %v157 = vsub.f32 %v134, 10.5
    %v158 = vsub.f32 %v135, 10.5
    %v159 = vsel %vm151, %v155, %v132
    %v160 = vsel %vm152, %v156, %v133
    %v161 = vsel %vm153, %v157, %v134
    %v162 = vsel %vm154, %v158, %v135
    %163 = vst [vmem:[#allocation2] sm:$0xff] %v159
    %164 = vst [vmem:[#allocation2 + $0x8] sm:$0xff] %v160
    %165 = vst [vmem:[#allocation2 + $0x10] sm:$0xff] %v161
    %166 = vst [vmem:[#allocation2 + $0x18] sm:$0xff] %v162
    // Predicated region
    $region18: #{fully_connected_am.1} parent=1 // pred_check
      _
    $region19: #{fully_connected_am.1} parent=1 // pred_check_branch
      %168 = sbr.rel (0) target = $region21
    $region20: #{fully_connected_am.1} parent=1 // pred_region
      %s170 = ssub.s32 512, 512
      %171 = vsyncadd [#allocation3], %s170
      %s172 = sshll.u32 [#allocation2], 4
      %s173 = int_to_ptr.vmem [resolvable:$true] %s172
      %178 = dma.vmem_to_hbm [thread:$0]  %s173, 512, %s4, [#allocation3], 256, 256, 16
    $region21: #{fully_connected_am.1} parent=1 // pred_fallthru
      _
    // Predicated region
    $region22: #{fully_connected_am.1} parent=1 // pred_check
      _
    $region23: #{fully_connected_am.1} parent=1 // pred_check_branch
      %180 = sbr.rel (0) target = $region25
    $region24: #{fully_connected_am.1} parent=1 // pred_region
      %181 = dma.done [#allocation3], 512
    $region25: #{fully_connected_am.1} parent=1 // pred_fallthru
      _
    %182 = vsyncpa [#allocation3], 1

</llo_original>
